<compile_context>
chip_gen: v5e
topology: v5e:2x2
jax: 0.10.0
libtpu: 0.0.40
codegen_flags: <defaults>
</compile_context>

<pallas_src>
import functools

import jax
import jax.numpy as jnp
from jax import lax
from jax.experimental import pallas as pl
from jax.experimental.pallas import tpu as pltpu

_LANE = 128       # output last dim padded to a lane-dense multiple of 128
_SUBLANE = 8


def _round_up(x: int, m: int) -> int:
    return ((x + m - 1) // m) * m


@functools.lru_cache(maxsize=None)
def _tpu_config():
    """Per-generation tuning knobs (conservative fallback if the generation is unknown)."""
    gen = 0
    try:
        kind = jax.devices()[0].device_kind.lower()
        for g in (7, 6, 5):
            if f"v{g}" in kind or f"tpu{g}" in kind:
                gen = g
                break
    except Exception:  # defensive: fall back to v7x-safe defaults
        gen = 0
    if gen >= 7:
        # v7x: 64 MiB VMEM per TC, ~3.2 TB/s HBM -> gather is descriptor/scalar-bound;
        # keep the double-buffered output tile modest and lean on many in-flight DMAs.
        return dict(vmem_limit=48 * 2**20, out_tile_bytes=8 * 2**20,
                    max_tokens_per_block=1024, fast_table_bytes=12 * 2**20,
                    fast_max_vocab=8192, fast_tpb=256, weak_mxu=False)
    if gen == 6:
        # v6e: 128 MiB VMEM, ~1.4 TB/s HBM -> big tiles amortize the ~0.35us/step overhead.
        return dict(vmem_limit=96 * 2**20, out_tile_bytes=16 * 2**20,
                    max_tokens_per_block=1024, fast_table_bytes=20 * 2**20,
                    fast_max_vocab=8192, fast_tpb=256, weak_mxu=False)
    if gen == 5:
        # v5e: 128 MiB VMEM, slow (~0.8 TB/s) HBM and a weak 4x128^2 MXU: large DMA tiles,
        # but gate the one-hot fast path more conservatively (especially for f32 tables).
        return dict(vmem_limit=96 * 2**20, out_tile_bytes=16 * 2**20,
                    max_tokens_per_block=1024, fast_table_bytes=8 * 2**20,
                    fast_max_vocab=2048, fast_tpb=128, weak_mxu=True)
    # Unknown generation: defaults that fit every chip (v7x-safe VMEM budget).
    return dict(vmem_limit=32 * 2**20, out_tile_bytes=4 * 2**20,
                max_tokens_per_block=256, fast_table_bytes=4 * 2**20,
                fast_max_vocab=4096, fast_tpb=128, weak_mxu=False)


# ----------------------------- fast path: table resident in VMEM --------------------------
def _embedding_onehot_kernel(ids_ref, table_ref, out_ref):
    """Gather via one-hot @ table on the MXU.

    ids_ref   : VMEM (tpb, 1) int32 token ids for this block
    table_ref : VMEM (vocab_pad, d_model_pad) full (padded) embedding table
    out_ref   : VMEM (tpb, d_model_pad) output tile
    """
    ids = ids_ref[...]                                              # (tpb, 1)
    tpb = ids.shape[0]
    vocab_pad = table_ref.shape[0]
    vocab_iota = lax.broadcasted_iota(jnp.int32, (tpb, vocab_pad), 1)
    # One-hot in the table dtype: for bf16 tables this runs at native bf16 MXU rate and is
    # bit-exact (each output row selects exactly one table row; accumulation stays f32).
    onehot = (ids == vocab_iota).astype(table_ref.dtype)            # (tpb, vocab_pad)
    out_ref[...] = jnp.dot(
        onehot, table_ref[...], preferred_element_type=jnp.float32
    ).astype(out_ref.dtype)


def _gather_onehot_vmem(ids_flat, table, d_model_pad, cfg):
    n = ids_flat.shape[0]
    vocab, d_model = table.shape
    vocab_pad = _round_up(vocab, _LANE)

    # Pad so the MXU contraction dim and the output lane dim are clean multiples of 128.
    # Padded rows are zero and never selected (ids are clamped to [0, vocab)).
    # TODO(synk): store fast-path tables pre-padded at parameter time so this pad (a full
    # table read+write) never materializes per forward call.
    table_p = jnp.pad(table, ((0, vocab_pad - vocab), (0, d_model_pad - d_model)))

    tpb = min(cfg["fast_tpb"], _round_up(n, _SUBLANE))   # 256 on v6e/v7x, 128 on v5e
    n_pad = _round_up(n, tpb)
    ids_p = jnp.zeros((n_pad, 1), jnp.int32).at[:n, 0].set(ids_flat)

    # TODO(synk): mark the constant table block single-buffered (pipeline_mode=pl.Buffered(1))
    # once universally supported; it frees one table-sized VMEM buffer and lets the
    # fast-path table cap grow further.
    return pl.pallas_call(
        _embedding_onehot_kernel,
        out_shape=jax.ShapeDtypeStruct((n_pad, d_model_pad), table.dtype),
        grid=(n_pad // tpb,),
        in_specs=[
            pl.BlockSpec((tpb, 1), lambda i: (i, 0)),
            pl.BlockSpec((vocab_pad, d_model_pad), lambda i: (0, 0)),  # table: constant block
        ],
        out_specs=pl.BlockSpec((tpb, d_model_pad), lambda i: (i, 0)),
        compiler_params=pltpu.CompilerParams(
            dimension_semantics=("parallel",),       # independent blocks -> megacore on v7x
            vmem_limit_bytes=cfg["vmem_limit"],
        ),
    )(ids_p, table_p)


# --------------------------- large-table path: per-row HBM DMA gather ---------------------
def _embedding_dma_gather_kernel(ids_ref, table_hbm, out_ref, sem, *, tokens_per_block):
    """One grid step gathers `tokens_per_block` embedding rows into the output tile.

    ids_ref   : SMEM (n_pad,) int32 scalar-prefetched token ids
    table_hbm : HBM  (vocab, d_model_pad)  (memory_space=pl.ANY, manual DMA)
    out_ref   : VMEM (tokens_per_block, d_model_pad) output tile
    sem       : single shared DMA semaphore
    """
    blk = pl.program_id(0)
    base = blk * tokens_per_block

    # Issue all row DMAs back-to-back so many copies stay in flight.
    def issue(t, carry):
        tok = ids_ref[base + t]
        pltpu.make_async_copy(table_hbm.at[tok], out_ref.at[t], sem).start()
        return carry

    lax.fori_loop(0, tokens_per_block, issue, 0, unroll=8)

    # Drain with ONE aggregated wait instead of tokens_per_block serialized waits:
    # every row copy above is identical-sized and signals the same semaphore, and DMA
    # semaphores count bytes, so a single descriptor covering the whole
    # (tokens_per_block, d_model_pad) tile waits for exactly the sum of all row copies.
    # NOTE: this is only exact because all row copies have equal byte size; keep it that way.
    pltpu.make_async_copy(
        table_hbm.at[pl.ds(0, tokens_per_block)], out_ref, sem
    ).wait()

    # TODO(synk): prefetch the real token count and skip the dummy row-0 DMAs for the padded
    # tail of the last block (requires a matching partial-tile wait).
    # TODO(synk): if profiling shows exposed DMA tail latency (mostly v5e), convert to a
    # manual double-buffered output (pl.ANY output + 2 VMEM slots) to overlap blocks.


def _gather_hbm_dma(ids_flat, table, d_model_pad, cfg):
    n = ids_flat.shape[0]
    vocab, d_model = table.shape
    itemsize = jnp.dtype(table.dtype).itemsize

    # Real models have d_model % 128 == 0, so this pad is usually a no-op.
    # TODO(synk): store large tables pre-padded so this per-call full-table pad never runs.
    if d_model_pad != d_model:
        table = jnp.pad(table, ((0, 0), (0, d_model_pad - d_model)))

    row_bytes = d_model_pad * itemsize
    tpb = min(cfg["max_tokens_per_block"],
              max(1, cfg["out_tile_bytes"] // row_bytes),
              _round_up(n, _SUBLANE))
    tpb = max(_SUBLANE, (tpb // _SUBLANE) * _SUBLANE)
    # Keep the aggregate-wait source slice in bounds of the table.
    if vocab >= _SUBLANE:
        tpb = min(tpb, (vocab // _SUBLANE) * _SUBLANE)
    # Keep the double-buffered output tile comfortably within the scoped VMEM limit
    # (important on v7x's 64 MiB-per-TC VMEM, and for huge-d_model edge cases).
    vmem_tokens = ((3 * cfg["vmem_limit"]) // 4) // (2 * row_bytes)
    tpb = min(tpb, max(_SUBLANE, (vmem_tokens // _SUBLANE) * _SUBLANE))
    n_pad = _round_up(n, tpb)

    # TODO(synk): for very large flattened N (100k+ tokens) chunk the call so the
    # scalar-prefetched ids stay within SMEM.
    ids_p = jnp.zeros((n_pad,), jnp.int32).at[:n].set(ids_flat)

    kernel = functools.partial(_embedding_dma_gather_kernel, tokens_per_block=tpb)
    return pl.pallas_call(
        kernel,
        out_shape=jax.ShapeDtypeStruct((n_pad, d_model_pad), table.dtype),
        grid_spec=pltpu.PrefetchScalarGridSpec(
            num_scalar_prefetch=1,                         # ids land in SMEM before the grid
            grid=(n_pad // tpb,),
            in_specs=[pl.BlockSpec(memory_space=pl.ANY)],  # table stays in HBM
            out_specs=pl.BlockSpec((tpb, d_model_pad), lambda i, ids: (i, 0)),
            scratch_shapes=[pltpu.SemaphoreType.DMA(())],  # one shared DMA semaphore
        ),
        compiler_params=pltpu.CompilerParams(
            dimension_semantics=("parallel",),             # disjoint output blocks
            vmem_limit_bytes=cfg["vmem_limit"],
        ),
    )(ids_p, table)


# ------------------------------------- public wrapper -------------------------------------
@functools.partial(jax.jit, static_argnames=("force_hbm_gather",))
def shared_embedding_forward(ids, table, *, force_hbm_gather=False):
    """Equivalent of SharedEmbedding.forward: returns table[ids] with trailing d_model axis."""
    cfg = _tpu_config()
    orig_shape = ids.shape
    vocab, d_model = table.shape
    d_model_pad = _round_up(d_model, _LANE)

    # Clamp like jnp.take (PyTorch would raise on out-of-range ids; clamping keeps the DMA
    # path in-bounds and matches JAX gather semantics).
    ids_flat = jnp.clip(ids.reshape(-1).astype(jnp.int32), 0, vocab - 1)
    n = ids_flat.shape[0]

    itemsize = jnp.dtype(table.dtype).itemsize
    fast_max_vocab = cfg["fast_max_vocab"]
    if cfg["weak_mxu"] and itemsize >= 4:
        # v5e + f32 table: the one-hot matmul loses to the DMA gather sooner.
        fast_max_vocab //= 2
    table_fits_vmem = (
        vocab * d_model_pad * itemsize <= cfg["fast_table_bytes"]
        and vocab <= fast_max_vocab
    )

    use_hbm = force_hbm_gather or not table_fits_vmem
    if vocab < _SUBLANE:
        use_hbm = False  # degenerate tiny vocab: always take the VMEM one-hot path

    if use_hbm:
        out_padded = _gather_hbm_dma(ids_flat, table, d_model_pad, cfg)
    else:
        out_padded = _gather_onehot_vmem(ids_flat, table, d_model_pad, cfg)

    return out_padded[:n, :d_model].reshape(*orig_shape, d_model)


def init_shared_embedding(key, vocab_size, d_model, padding_idx=None, dtype=jnp.float32):
    """Matches nn.Embedding init: weight ~ N(0, 1), padding_idx row zeroed
    (the only forward-visible effect of padding_idx)."""
    table = jax.random.normal(key, (vocab_size, d_model), dtype=dtype)
    if padding_idx is not None:
        table = table.at[padding_idx].set(0.0)
    return table


if __name__ == "__main__":
    key = jax.random.PRNGKey(0)
    k_table, k_ids = jax.random.split(key)

    vocab_size, d_model, padding_idx = 50, 32, 0
    batch, seq = 2, 8

    table = init_shared_embedding(k_table, vocab_size, d_model, padding_idx=padding_idx)
    ids = jax.random.randint(k_ids, (batch, seq), 0, vocab_size, dtype=jnp.int32)

    ref = jnp.take(table, ids, axis=0)

    # Fast path: tiny table -> VMEM-resident one-hot @ table on the MXU.
    out_fast = jax.block_until_ready(shared_embedding_forward(ids, table))
    assert out_fast.shape == (batch, seq, d_model)
    assert jnp.allclose(out_fast, ref, atol=1e-5, rtol=1e-5), "fast path mismatch vs reference"

    # Large-table path: per-row HBM->VMEM DMA gather with aggregated wait (forced for coverage).
    out_dma = jax.block_until_ready(
        shared_embedding_forward(ids, table, force_hbm_gather=True)
    )
    assert out_dma.shape == (batch, seq, d_model)
    assert jnp.allclose(out_dma, ref), "HBM DMA gather path mismatch vs reference"

    print("KERNEL_OK")
</pallas_src>

<mosaic_0001>
module attributes {stable_mosaic.version = 11 : i64} {
  func.func @_embedding_onehot_kernel(%arg0: i32, %arg1: memref<16x1xi32, #tpu.memory_space<vmem>>, %arg2: memref<128x128xf32, #tpu.memory_space<vmem>>, %arg3: memref<16x128xf32, #tpu.memory_space<vmem>>) attributes {dimension_semantics = [#tpu.dimension_semantics<parallel>], iteration_bounds = array<i64: 1>, scalar_prefetch = 0 : i64, scratch_operands = 0 : i64, tpu.core_type = #tpu.core_type<tc>, window_params = [{transform_indices = @transform_0, window_bounds = array<i64: 16, 1>}, {pipeline_mode = #tpu.pipeline_mode<synchronous>, transform_indices = @transform_1, window_bounds = array<i64: 128, 128>}, {transform_indices = @transform_2, window_bounds = array<i64: 16, 128>}]} {
    %c0 = arith.constant 0 : index
    %c0_0 = arith.constant 0 : index
    %0 = vector.load %arg1[%c0, %c0_0] : memref<16x1xi32, #tpu.memory_space<vmem>>, vector<16x1xi32>
    %1 = tpu.iota {dimensions = array<i32: 1>} : vector<16x128xi32>
    %2 = vector.broadcast %0 : vector<16x1xi32> to vector<16x128xi32>
    %3 = arith.cmpi eq, %2, %1 : vector<16x128xi32>
    %4 = arith.extui %3 : vector<16x128xi1> to vector<16x128xi32>
    %5 = arith.sitofp %4 : vector<16x128xi32> to vector<16x128xf32>
    %c0_1 = arith.constant 0 : index
    %c0_2 = arith.constant 0 : index
    %6 = vector.load %arg2[%c0_1, %c0_2] : memref<128x128xf32, #tpu.memory_space<vmem>>, vector<128x128xf32>
    %cst = arith.constant dense<0.000000e+00> : vector<16x128xf32>
    %7 = tpu.matmul %5, %6, %cst {dimension_numbers = #tpu.dot_dimension_numbers<[1], [0], [0], [1], [0, 0, 1, 1], [], []>} : vector<16x128xf32>, vector<128x128xf32>, vector<16x128xf32> -> vector<16x128xf32>
    %c0_3 = arith.constant 0 : index
    %c0_4 = arith.constant 0 : index
    %8 = vector.load %arg3[%c0_3, %c0_4] : memref<16x128xf32, #tpu.memory_space<vmem>>, vector<16x128xf32>
    tpu.vector_store %arg3[%c0_3, %c0_4], %7 {strides = array<i32>} : memref<16x128xf32, #tpu.memory_space<vmem>>, vector<16x128xf32>,
    return
  }
  func.func @transform_0(%arg0: i32) -> (i32, i32) {
    %c0_i32 = arith.constant 0 : i32
    %c0_i32_0 = arith.constant 0 : i32
    return %arg0, %c0_i32 : i32, i32
  }
  func.func @transform_1(%arg0: i32) -> (i32, i32) {
    %c0_i32 = arith.constant 0 : i32
    %c0_i32_0 = arith.constant 0 : i32
    %c0_i32_1 = arith.constant 0 : i32
    return %c0_i32, %c0_i32_0 : i32, i32
  }
  func.func @transform_2(%arg0: i32) -> (i32, i32) {
    %c0_i32 = arith.constant 0 : i32
    %c0_i32_0 = arith.constant 0 : i32
    return %arg0, %c0_i32 : i32, i32
  }
}

</mosaic_0001>

<llo_original>
// kernel: shared_embedding_forward.1
$region0: #{shared_embedding_forward.1}
  #allocation0 [shape = 'u32[]', space=smem, size = 0x4, offset = 0x4, fixed_abs, tag = 'smem constant byte address 0x4 - core index']
  #allocation1 [shape = 'u32[72,128]{1,0:T(1,128)}', space=vmem, size = 0x9000, scoped, tag = 'internal scratch']
  %s0 = inlined_call_operand.vmem [shape: s32[16,1], index: 0, kind: input, shape index: {}]
  %s1 = inlined_call_operand.vmem [shape: f32[128,128], index: 1, kind: input, shape index: {}]
  %s2 = inlined_call_operand.vmem [shape: f32[16,128], index: 2, kind: output, shape index: {}]
  %s3 = sld [smem:[#allocation0]]
  $region18: #{shared_embedding_forward.1} parent=0
    _
  %s5 = ssub.s32 1, %s3
  %s6 = scalar_select 0, %s5, %s3
  // Predicated region
  $region2: #{shared_embedding_forward.1} parent=0 // pred_check
    _
  $region3: #{shared_embedding_forward.1} parent=0 // pred_check_branch
    %8 = sbr.rel (0) target = $region5
  $region4: #{shared_embedding_forward.1} parent=0 // pred_region
    _
  $region5: #{shared_embedding_forward.1} parent=0 // pred_fallthru
    _
  // Predicated region
  $region6: #{shared_embedding_forward.1} parent=0 // pred_check
    _
  $region7: #{shared_embedding_forward.1} parent=0 // pred_check_branch
    %10 = sbr.rel (0) target = $region9
  $region8: #{shared_embedding_forward.1} parent=0 // pred_region
    _
  $region9: #{shared_embedding_forward.1} parent=0 // pred_fallthru
    _
  %v11 = vld [vmem:[%s0] sm:$0xff]
  %v12 = vld [vmem:[%s0 + $0x8] sm:$0xff]
  %v13 = vlaneseq
  %v14 = vand.u32 %v13, 127
  %15 = vset.pattern.permute.xlu0 0
  %16 = vperm.xlu0 %15, %v11
  %v17 = vpop.permute.xlu0 %16
  %18 = vset.pattern.permute.xlu0 0
  %19 = vperm.xlu0 %18, %v12
  %v20 = vpop.permute.xlu0 %19
  %vm21 = vcmp.eq.s32.totalorder %v17, %v14
  %vm22 = vcmp.eq.s32.totalorder %v20, %v14
  %v23 = vsel %vm21, 1, 0
  %v24 = vsel %vm22, 1, 0
  %v25 = vcvt.s32.f32 %v23
  %v26 = vcvt.s32.f32 %v24
  %v27 = vld [vmem:[%s1] sm:$0xff]
  %v28 = vld [vmem:[%s1 + $0x8] sm:$0xff]
  %v29 = vld [vmem:[%s1 + $0x10] sm:$0xff]
  %v30 = vld [vmem:[%s1 + $0x18] sm:$0xff]
  %v31 = vld [vmem:[%s1 + $0x20] sm:$0xff]
  %v32 = vld [vmem:[%s1 + $0x28] sm:$0xff]
  %v33 = vld [vmem:[%s1 + $0x30] sm:$0xff]
  %v34 = vld [vmem:[%s1 + $0x38] sm:$0xff]
  %v35 = vld [vmem:[%s1 + $0x40] sm:$0xff]
  %v36 = vld [vmem:[%s1 + $0x48] sm:$0xff]
  %v37 = vld [vmem:[%s1 + $0x50] sm:$0xff]
  %v38 = vld [vmem:[%s1 + $0x58] sm:$0xff]
  %v39 = vld [vmem:[%s1 + $0x60] sm:$0xff]
  %v40 = vld [vmem:[%s1 + $0x68] sm:$0xff]
  %v41 = vld [vmem:[%s1 + $0x70] sm:$0xff]
  %v42 = vld [vmem:[%s1 + $0x78] sm:$0xff]
  %43 = vmatpush.msra.mxu0 %v42
  %44 = vmatpush.msra.mxu0 %v41
  %45 = vmatpush.msra.mxu0 %v40
  %46 = vmatpush.msra.mxu0 %v39
  %47 = vmatpush.msra.mxu0 %v38
  %48 = vmatpush.msra.mxu0 %v37
  %49 = vmatpush.msra.mxu0 %v36
  %50 = vmatpush.msra.mxu0 %v35
  %51 = vmatpush.msra.mxu0 %v34
  %52 = vmatpush.msra.mxu0 %v33
  %53 = vmatpush.msra.mxu0 %v32
  %54 = vmatpush.msra.mxu0 %v31
  %55 = vmatpush.msra.mxu0 %v30
  %56 = vmatpush.msra.mxu0 %v29
  %57 = vmatpush.msra.mxu0 %v28
  %58 = vmatpush.msra.mxu0 %v27
  %59 = vmatmul.f32.gmra.mxu0 %v25
  %v60 = vpop.f32.mrf.mxu0
  %v61 = vadd.f32 0.0, %v60
  %62 = vmatmul.f32.gmra.mxu0 %v26
  %v63 = vpop.f32.mrf.mxu0
  %v64 = vadd.f32 0.0, %v63
  %65 = vdwg.mxu0
  %66 = vst [vmem:[%s2] sm:$0xff] %v61
  %67 = vst [vmem:[%s2 + $0x8] sm:$0xff] %v64
  // Predicated region
  $region10: #{shared_embedding_forward.1} parent=0 // pred_check
    _
  $region11: #{shared_embedding_forward.1} parent=0 // pred_check_branch
    %69 = sbr.rel (0) target = $region13
  $region12: #{shared_embedding_forward.1} parent=0 // pred_region
    _
  $region13: #{shared_embedding_forward.1} parent=0 // pred_fallthru
    _
  // Predicated region
  $region14: #{shared_embedding_forward.1} parent=0 // pred_check
    _
  $region15: #{shared_embedding_forward.1} parent=0 // pred_check_branch
    %71 = sbr.rel (0) target = $region17
  $region16: #{shared_embedding_forward.1} parent=0 // pred_region
    _
  $region17: #{shared_embedding_forward.1} parent=0 // pred_fallthru
    _

</llo_original>
